<compile_context>
chip_gen: v6e
topology: v6e:2x2x1
jax: 0.10.0
libtpu: 0.0.40
codegen_flags: <defaults>
</compile_context>

<pallas_src>
import jax
import jax.numpy as jnp
from jax.experimental import pallas as pl
from jax.experimental.pallas import tpu as pltpu

_BLOCK_N = 512  # rows of the batch per grid step (>=512 amortizes grid overhead)


def stl_kernel(x_ref, embed_ref, wq_ref, wkv_ref,
               style_ref, tb_ref, scores_ref):
    # x:     [tN, D]   query inputs (f32)
    # embed: [T, D]    raw style tokens (f32)
    # wq:    [D, D]    bf16, already [in, out]
    # wkv:   [D, 2D]   bf16, [in, out], columns = [W_key | W_value]
    D = x_ref.shape[-1]
    T = embed_ref.shape[0]
    S = scores_ref.shape[-1]            # lane-padded scores width (>= T)

    x = x_ref[...].astype(jnp.float32)
    tb = jnp.tanh(embed_ref[...].astype(jnp.float32))            # [T, D]

    # bf16 operands into the MXU, f32 accumulation.
    x_b = x.astype(jnp.bfloat16)
    tb_b = tb.astype(jnp.bfloat16)

    q = jnp.dot(x_b, wq_ref[...], preferred_element_type=jnp.float32)     # [tN, D]
    kv = jnp.dot(tb_b, wkv_ref[...], preferred_element_type=jnp.float32)  # [T, 2D]
    k = kv[:, :D]                                                         # [T, D]
    v = kv[:, D:]                                                         # [T, D]

    # Scaled dot-product scores; contract last dims of q and k directly
    # (transposed-RHS matmul path, no explicit k.T through the XLU).
    s = jax.lax.dot_general(q, k, (((1,), (1,)), ((), ())),
                            preferred_element_type=jnp.float32)           # [tN, T]
    s = s * (1.0 / (D ** 0.5))

    # Softmax over the template axis.
    m = jnp.max(s, axis=-1, keepdims=True)
    e = jnp.exp(s - m)
    denom = jnp.sum(e, axis=-1, keepdims=True)
    p = e * pl.reciprocal(denom, approx=True)                             # [tN, T]

    # Weighted sum of values -> style embedding.
    out = jnp.dot(p, v, preferred_element_type=jnp.float32)               # [tN, D]

    # Lane-dense scores: scatter the T columns into the padded S lanes via an
    # exact one-hot matmul so the store is a full-width vst, not a masked one.
    row = jax.lax.broadcasted_iota(jnp.int32, (T, S), 0)
    col = jax.lax.broadcasted_iota(jnp.int32, (T, S), 1)
    expand = (row == col).astype(jnp.float32)                             # [T, S]
    p_pad = jnp.dot(p, expand, preferred_element_type=jnp.float32)        # [tN, S]

    style_ref[...] = out.astype(style_ref.dtype)
    tb_ref[...] = tb.astype(tb_ref.dtype)
    scores_ref[...] = p_pad.astype(scores_ref.dtype)


def prepare_stl_params(embed, w_query, w_key, w_value):
    """One-time packing of STL parameters into kernel layout (done at init,
    NOT per forward call): transpose nn.Linear [out, in] weights to [in, out],
    fuse W_key|W_value into one [D, 2D] block, store weights as bf16."""
    wq = w_query.T.astype(jnp.bfloat16)                                        # [D, D]
    wkv = jnp.concatenate([w_key.T, w_value.T], axis=1).astype(jnp.bfloat16)   # [D, 2D]
    return embed.astype(jnp.float32), wq, wkv


@jax.jit
def stl_forward(inputs, params):
    """inputs: [N, D]; params from prepare_stl_params.

    Returns (style_embed [N,1,D], template_banks [N,T,D],
             attention_score [1,N,1,T]) matching PyTorch STL.forward.
    """
    embed, wq, wkv = params
    N, D = inputs.shape
    T = embed.shape[0]
    S = pl.cdiv(T, 128) * 128           # lane-padded scores width
    tn = N if N <= _BLOCK_N else _BLOCK_N
    grid = (pl.cdiv(N, tn),)

    style, tb, scores_pad = pl.pallas_call(
        stl_kernel,
        out_shape=(
            jax.ShapeDtypeStruct((N, D), jnp.float32),
            jax.ShapeDtypeStruct((T, D), jnp.float32),
            jax.ShapeDtypeStruct((N, S), jnp.float32),
        ),
        grid=grid,
        in_specs=[
            pl.BlockSpec((tn, D), lambda i: (i, 0)),      # x: tiled over N
            pl.BlockSpec((T, D), lambda i: (0, 0)),       # embed: resident
            pl.BlockSpec((D, D), lambda i: (0, 0)),       # Wq (bf16)
            pl.BlockSpec((D, 2 * D), lambda i: (0, 0)),   # Wk|Wv fused (bf16)
        ],
        out_specs=(
            pl.BlockSpec((tn, D), lambda i: (i, 0)),      # style
            pl.BlockSpec((T, D), lambda i: (0, 0)),       # template banks (idempotent rewrites)
            pl.BlockSpec((tn, S), lambda i: (i, 0)),      # lane-padded scores
        ),
        compiler_params=pltpu.CompilerParams(
            dimension_semantics=("parallel",)),
    )(inputs, embed, wq, wkv)

    # Recover PyTorch output shapes / broadcasting.
    style_embed = style.reshape(N, 1, D)                            # [N, 1, D]
    template_banks = jnp.broadcast_to(tb[None, :, :], (N, T, D))    # [N, T, D]
    attention_score = scores_pad[:, :T].reshape(1, N, 1, T)         # [1, N, 1, T]
    return style_embed, template_banks, attention_score


def reference_forward(inputs, embed, w_query, w_key, w_value):
    """Pure-JAX f32 reference mirroring the PyTorch code (num_heads=1)."""
    N, D = inputs.shape
    query = inputs[:, None, :]                                   # [N, 1, D]
    tb = jnp.tanh(embed)[None].repeat(N, axis=0)                 # [N, T, D]
    q = query @ w_query.T                                        # [N, 1, D]
    k = tb @ w_key.T                                             # [N, T, D]
    v = tb @ w_value.T                                           # [N, T, D]
    qs, ks, vs = q[None], k[None], v[None]
    s = (qs @ jnp.swapaxes(ks, 2, 3)) / (D ** 0.5)               # [1, N, 1, T]
    s = jax.nn.softmax(s, axis=3)
    out = (s @ vs)[0]                                            # [N, 1, D]
    return out, tb, s


if __name__ == "__main__":
    # Module defaults: template_num=4, embed_dim=128, atten_heads=1.
    N, T, D = 8, 4, 128

    key = jax.random.PRNGKey(0)
    k_x, k_e, k_q, k_k, k_v = jax.random.split(key, 5)

    inputs = jax.random.normal(k_x, (N, D), dtype=jnp.float32)
    # init.normal_(embed, mean=0, std=0.5)
    embed = 0.5 * jax.random.normal(k_e, (T, D), dtype=jnp.float32)
    # nn.Linear(bias=False) weights, PyTorch layout [out_features, in_features].
    bound = 1.0 / (D ** 0.5)
    w_query = jax.random.uniform(k_q, (D, D), jnp.float32, -bound, bound)
    w_key = jax.random.uniform(k_k, (D, D), jnp.float32, -bound, bound)
    w_value = jax.random.uniform(k_v, (D, D), jnp.float32, -bound, bound)

    # Weight packing happens once, outside the per-call hot path.
    params = prepare_stl_params(embed, w_query, w_key, w_value)
    params = jax.block_until_ready(params)

    style, banks, scores = stl_forward(inputs, params)
    jax.block_until_ready((style, banks, scores))

    ref_style, ref_banks, ref_scores = reference_forward(
        inputs, embed, w_query, w_key, w_value)

    assert style.shape == (N, 1, D)
    assert banks.shape == (N, T, D)
    assert scores.shape == (1, N, 1, T)
    # Template banks are pure f32 tanh -> tight tolerance.  Style / scores use
    # bf16 MXU operands + approx reciprocal, so compare at mixed-precision
    # tolerances against the pure-f32 reference.
    assert jnp.allclose(banks, ref_banks, atol=1e-5, rtol=1e-5)
    assert jnp.allclose(scores, ref_scores, atol=2e-2, rtol=2e-2)
    assert jnp.allclose(style, ref_style, atol=2e-2, rtol=2e-2)

    print("KERNEL_OK")
</pallas_src>

<mosaic_0001>
module attributes {stable_mosaic.version = 11 : i64} {
  func.func @stl_kernel(%arg0: i32, %arg1: memref<8x128xf32, #tpu.memory_space<vmem>>, %arg2: memref<4x128xf32, #tpu.memory_space<vmem>>, %arg3: memref<128x128xbf16, #tpu.memory_space<vmem>>, %arg4: memref<128x256xbf16, #tpu.memory_space<vmem>>, %arg5: memref<8x128xf32, #tpu.memory_space<vmem>>, %arg6: memref<4x128xf32, #tpu.memory_space<vmem>>, %arg7: memref<8x128xf32, #tpu.memory_space<vmem>>) attributes {dimension_semantics = [#tpu.dimension_semantics<parallel>], iteration_bounds = array<i64: 1>, scalar_prefetch = 0 : i64, scratch_operands = 0 : i64, tpu.core_type = #tpu.core_type<tc>, window_params = [{transform_indices = @transform_0, window_bounds = array<i64: 8, 128>}, {pipeline_mode = #tpu.pipeline_mode<synchronous>, transform_indices = @transform_1, window_bounds = array<i64: 4, 128>}, {pipeline_mode = #tpu.pipeline_mode<synchronous>, transform_indices = @transform_2, window_bounds = array<i64: 128, 128>}, {pipeline_mode = #tpu.pipeline_mode<synchronous>, transform_indices = @transform_3, window_bounds = array<i64: 128, 256>}, {transform_indices = @transform_4, window_bounds = array<i64: 8, 128>}, {pipeline_mode = #tpu.pipeline_mode<synchronous>, transform_indices = @transform_5, window_bounds = array<i64: 4, 128>}, {transform_indices = @transform_6, window_bounds = array<i64: 8, 128>}]} {
    %c0 = arith.constant 0 : index
    %c0_0 = arith.constant 0 : index
    %0 = vector.load %arg1[%c0, %c0_0] : memref<8x128xf32, #tpu.memory_space<vmem>>, vector<8x128xf32>
    %c0_1 = arith.constant 0 : index
    %c0_2 = arith.constant 0 : index
    %1 = vector.load %arg2[%c0_1, %c0_2] : memref<4x128xf32, #tpu.memory_space<vmem>>, vector<4x128xf32>
    %2 = math.tanh %1 : vector<4x128xf32>
    %3 = arith.truncf %0 : vector<8x128xf32> to vector<8x128xbf16>
    %4 = arith.truncf %2 : vector<4x128xf32> to vector<4x128xbf16>
    %c0_3 = arith.constant 0 : index
    %c0_4 = arith.constant 0 : index
    %5 = vector.load %arg3[%c0_3, %c0_4] : memref<128x128xbf16, #tpu.memory_space<vmem>>, vector<128x128xbf16>
    %cst = arith.constant dense<0.000000e+00> : vector<8x128xf32>
    %6 = tpu.matmul %3, %5, %cst {dimension_numbers = #tpu.dot_dimension_numbers<[1], [0], [0], [1], [0, 0, 1, 1], [], []>} : vector<8x128xbf16>, vector<128x128xbf16>, vector<8x128xf32> -> vector<8x128xf32>
    %c0_5 = arith.constant 0 : index
    %c0_6 = arith.constant 0 : index
    %7 = vector.load %arg4[%c0_5, %c0_6] : memref<128x256xbf16, #tpu.memory_space<vmem>>, vector<128x256xbf16>
    %cst_7 = arith.constant dense<0.000000e+00> : vector<4x256xf32>
    %8 = tpu.matmul %4, %7, %cst_7 {dimension_numbers = #tpu.dot_dimension_numbers<[1], [0], [0], [1], [0, 0, 1, 1], [], []>} : vector<4x128xbf16>, vector<128x256xbf16>, vector<4x256xf32> -> vector<4x256xf32>
    %9 = vector.extract_strided_slice %8 {offsets = [0, 0], sizes = [4, 128], strides = [1, 1]} : vector<4x256xf32> to vector<4x128xf32>
    %10 = vector.extract_strided_slice %8 {offsets = [0, 128], sizes = [4, 128], strides = [1, 1]} : vector<4x256xf32> to vector<4x128xf32>
    %cst_8 = arith.constant dense<0.000000e+00> : vector<8x4xf32>
    %11 = tpu.matmul %6, %9, %cst_8 {dimension_numbers = #tpu.dot_dimension_numbers<[1], [1], [0], [0], [0, 0, 1, 0], [], []>} : vector<8x128xf32>, vector<4x128xf32>, vector<8x4xf32> -> vector<8x4xf32>
    %cst_9 = arith.constant 0.0883883461 : f32
    %12 = vector.broadcast %cst_9 : f32 to vector<8x4xf32>
    %13 = arith.mulf %11, %12 : vector<8x4xf32>
    %cst_10 = arith.constant dense<0xFF800000> : vector<8xf32>
    %14 = vector.multi_reduction <maximumf>, %13, %cst_10 [1] : vector<8x4xf32> to vector<8xf32>
    %15 = vector.shape_cast %14 : vector<8xf32> to vector<8x1xf32>
    %16 = vector.broadcast %15 : vector<8x1xf32> to vector<8x4xf32>
    %17 = arith.subf %13, %16 : vector<8x4xf32>
    %18 = math.exp %17 : vector<8x4xf32>
    %cst_11 = arith.constant dense<0.000000e+00> : vector<8xf32>
    %19 = vector.multi_reduction <add>, %18, %cst_11 [1] : vector<8x4xf32> to vector<8xf32>
    %20 = vector.shape_cast %19 : vector<8xf32> to vector<8x1xf32>
    %21 = tpu.reciprocal %20 {approx = true} : vector<8x1xf32> -> vector<8x1xf32>
    %22 = vector.broadcast %21 : vector<8x1xf32> to vector<8x4xf32>
    %23 = arith.mulf %18, %22 : vector<8x4xf32>
    %cst_12 = arith.constant dense<0.000000e+00> : vector<8x128xf32>
    %24 = tpu.matmul %23, %10, %cst_12 {dimension_numbers = #tpu.dot_dimension_numbers<[1], [0], [0], [1], [0, 0, 1, 1], [], []>} : vector<8x4xf32>, vector<4x128xf32>, vector<8x128xf32> -> vector<8x128xf32>
    %25 = tpu.iota {dimensions = array<i32: 0>} : vector<4x128xi32>
    %26 = tpu.iota {dimensions = array<i32: 1>} : vector<4x128xi32>
    %27 = arith.cmpi eq, %25, %26 : vector<4x128xi32>
    %28 = arith.extui %27 : vector<4x128xi1> to vector<4x128xi32>
    %29 = arith.sitofp %28 : vector<4x128xi32> to vector<4x128xf32>
    %cst_13 = arith.constant dense<0.000000e+00> : vector<8x128xf32>
    %30 = tpu.matmul %23, %29, %cst_13 {dimension_numbers = #tpu.dot_dimension_numbers<[1], [0], [0], [1], [0, 0, 1, 1], [], []>} : vector<8x4xf32>, vector<4x128xf32>, vector<8x128xf32> -> vector<8x128xf32>
    %c0_14 = arith.constant 0 : index
    %c0_15 = arith.constant 0 : index
    %31 = vector.load %arg5[%c0_14, %c0_15] : memref<8x128xf32, #tpu.memory_space<vmem>>, vector<8x128xf32>
    tpu.vector_store %arg5[%c0_14, %c0_15], %24 {strides = array<i32>} : memref<8x128xf32, #tpu.memory_space<vmem>>, vector<8x128xf32>,
    %c0_16 = arith.constant 0 : index
    %c0_17 = arith.constant 0 : index
    %32 = vector.load %arg6[%c0_16, %c0_17] : memref<4x128xf32, #tpu.memory_space<vmem>>, vector<4x128xf32>
    tpu.vector_store %arg6[%c0_16, %c0_17], %2 {strides = array<i32>} : memref<4x128xf32, #tpu.memory_space<vmem>>, vector<4x128xf32>,
    %c0_18 = arith.constant 0 : index
    %c0_19 = arith.constant 0 : index
    %33 = vector.load %arg7[%c0_18, %c0_19] : memref<8x128xf32, #tpu.memory_space<vmem>>, vector<8x128xf32>
    tpu.vector_store %arg7[%c0_18, %c0_19], %30 {strides = array<i32>} : memref<8x128xf32, #tpu.memory_space<vmem>>, vector<8x128xf32>,
    return
  }
  func.func @transform_0(%arg0: i32) -> (i32, i32) {
    %c0_i32 = arith.constant 0 : i32
    %c0_i32_0 = arith.constant 0 : i32
    return %arg0, %c0_i32 : i32, i32
  }
  func.func @transform_1(%arg0: i32) -> (i32, i32) {
    %c0_i32 = arith.constant 0 : i32
    %c0_i32_0 = arith.constant 0 : i32
    %c0_i32_1 = arith.constant 0 : i32
    return %c0_i32, %c0_i32_0 : i32, i32
  }
  func.func @transform_2(%arg0: i32) -> (i32, i32) {
    %c0_i32 = arith.constant 0 : i32
    %c0_i32_0 = arith.constant 0 : i32
    %c0_i32_1 = arith.constant 0 : i32
    return %c0_i32, %c0_i32_0 : i32, i32
  }
  func.func @transform_3(%arg0: i32) -> (i32, i32) {
    %c0_i32 = arith.constant 0 : i32
    %c0_i32_0 = arith.constant 0 : i32
    %c0_i32_1 = arith.constant 0 : i32
    return %c0_i32, %c0_i32_0 : i32, i32
  }
  func.func @transform_4(%arg0: i32) -> (i32, i32) {
    %c0_i32 = arith.constant 0 : i32
    %c0_i32_0 = arith.constant 0 : i32
    return %arg0, %c0_i32 : i32, i32
  }
  func.func @transform_5(%arg0: i32) -> (i32, i32) {
    %c0_i32 = arith.constant 0 : i32
    %c0_i32_0 = arith.constant 0 : i32
    %c0_i32_1 = arith.constant 0 : i32
    return %c0_i32, %c0_i32_0 : i32, i32
  }
  func.func @transform_6(%arg0: i32) -> (i32, i32) {
    %c0_i32 = arith.constant 0 : i32
    %c0_i32_0 = arith.constant 0 : i32
    return %arg0, %c0_i32 : i32, i32
  }
}

</mosaic_0001>

<llo_original>
// kernel: stl_forward.1
$region0: #{stl_forward.1}
  #allocation0 [shape = 'u32[]', space=smem, size = 0x4, offset = 0x4, fixed_abs, tag = 'smem constant byte address 0x4 - core index']
  #allocation1 [shape = 'u32[144,128]{1,0:T(1,128)}', space=vmem, size = 0x12000, scoped, tag = 'internal scratch']
  %s0 = inlined_call_operand.hbm [shape: f32[8,128], index: 0, kind: input, shape index: {}]
  %s1 = inlined_call_operand.hbm [shape: f32[4,128], index: 1, kind: input, shape index: {}]
  %s2 = inlined_call_operand.hbm [shape: bf16[128,128], index: 2, kind: input, shape index: {}]
  %s3 = inlined_call_operand.hbm [shape: bf16[128,256], index: 3, kind: input, shape index: {}]
  %s4 = inlined_call_operand.hbm [shape: f32[8,128], index: 4, kind: output, shape index: {0}]
  %s5 = inlined_call_operand.vmem [shape: f32[4,128], index: 5, kind: output, shape index: {1}]
  %s6 = inlined_call_operand.vmem [shape: f32[8,128], index: 6, kind: output, shape index: {2}]
  %7 = xla_tuple %s4, %s5, %s6
  %s8 = sld [smem:[#allocation0]]
  $region58: #{stl_forward.1} parent=0
    _
  %s10 = ssub.s32 1, %s8
  %s11 = scalar_select 0, %s10, %s8
  $region1: #{stl_forward.1} parent=0
    #allocation2 [shape = 'u8[4096]{0}', space=vmem, size = 0x1000, scoped, tag = 'input window, operand 0, single buffered']
    #allocation3 [shape = 's32[1]{0}', space=sflag, size = 0x4, scoped, tag = 'scoped memory for stl_forward.1']
    #allocation4 [shape = 's32[1]{0}', space=sflag, size = 0x4, scoped, tag = 'scoped memory for stl_forward.1']
    #allocation5 [shape = 'u8[2048]{0}', space=vmem, size = 0x800, scoped, tag = 'input window, operand 1, single buffered']
    #allocation6 [shape = 's32[1]{0}', space=sflag, size = 0x4, scoped, tag = 'scoped memory for stl_forward.1']
    #allocation7 [shape = 'u8[32768]{0}', space=vmem, size = 0x8000, scoped, tag = 'input window, operand 2, single buffered']
    #allocation8 [shape = 'u8[65536]{0}', space=vmem, size = 0x10000, scoped, tag = 'input window, operand 3, single buffered']
    #allocation9 [shape = 's32[1]{0}', space=sflag, size = 0x4, scoped, tag = 'scoped memory for stl_forward.1']
    #allocation10 [shape = 'u8[4096]{0}', space=vmem, size = 0x1000, scoped, tag = 'output window, operand 0, single buffered']
    %12 = vsyncpa [#allocation3], 0
    %13 = vsyncpa [#allocation6], 0
    %14 = vsyncpa [#allocation9], 0
    %15 = vsyncpa [#allocation4], 0
    // Predicated region
    $region2: #{stl_forward.1} parent=1 // pred_check
      _
    $region3: #{stl_forward.1} parent=1 // pred_check_branch
      %17 = sbr.rel (0) target = $region5
    $region4: #{stl_forward.1} parent=1 // pred_region
      %s19 = ssub.s32 128, 128
      %20 = vsyncadd [#allocation3], %s19
      %s22 = sshll.u32 [#allocation2], 4
      %s23 = int_to_ptr.vmem [resolvable:$true] %s22
      %25 = dma.hbm_to_vmem [thread:$0]  %s0, 128, %s23, [#allocation3]
    $region5: #{stl_forward.1} parent=1 // pred_fallthru
      _
    // Predicated region
    $region6: #{stl_forward.1} parent=1 // pred_check
      _
    $region7: #{stl_forward.1} parent=1 // pred_check_branch
      %27 = sbr.rel (0) target = $region9
    $region8: #{stl_forward.1} parent=1 // pred_region
      %s29 = ssub.s32 64, 64
      %30 = vsyncadd [#allocation6], %s29
      %s32 = sshll.u32 [#allocation5], 4
      %s33 = int_to_ptr.vmem [resolvable:$true] %s32
      %35 = dma.hbm_to_vmem [thread:$0]  %s1, 64, %s33, [#allocation6]
    $region9: #{stl_forward.1} parent=1 // pred_fallthru
      _
    // Predicated region
    $region10: #{stl_forward.1} parent=1 // pred_check
      _
    $region11: #{stl_forward.1} parent=1 // pred_check_branch
      %37 = sbr.rel (0) target = $region13
    $region12: #{stl_forward.1} parent=1 // pred_region
      %s39 = ssub.s32 1024, 1024
      %40 = vsyncadd [#allocation6], %s39
      %s41 = sshll.u32 [#allocation7], 4
      %s42 = int_to_ptr.vmem [resolvable:$true] %s41
      %47 = dma.hbm_to_vmem [thread:$0]  %s2, 1024, %s42, [#allocation6], 64, 64, 4
    $region13: #{stl_forward.1} parent=1 // pred_fallthru
      _
    // Predicated region
    $region14: #{stl_forward.1} parent=1 // pred_check
      _
    $region15: #{stl_forward.1} parent=1 // pred_check_branch
      %49 = sbr.rel (0) target = $region17
    $region16: #{stl_forward.1} parent=1 // pred_region
      %s51 = ssub.s32 2048, 2048
      %52 = vsyncadd [#allocation9], %s51
      %s53 = sshll.u32 [#allocation8], 4
      %s54 = int_to_ptr.vmem [resolvable:$true] %s53
      %59 = dma.hbm_to_vmem [thread:$0]  %s3, 2048, %s54, [#allocation9], 128, 128, 8
    $region17: #{stl_forward.1} parent=1 // pred_fallthru
      _
    // Predicated region
    $region18: #{stl_forward.1} parent=1 // pred_check
      _
    $region19: #{stl_forward.1} parent=1 // pred_check_branch
      %61 = sbr.rel (0) target = $region21
    $region20: #{stl_forward.1} parent=1 // pred_region
      %62 = dma.done [#allocation3], 128
    $region21: #{stl_forward.1} parent=1 // pred_fallthru
      _
    // Predicated region
    $region22: #{stl_forward.1} parent=1 // pred_check
      _
    $region23: #{stl_forward.1} parent=1 // pred_check_branch
      %64 = sbr.rel (0) target = $region25
    $region24: #{stl_forward.1} parent=1 // pred_region
      %65 = dma.done [#allocation6], 64
    $region25: #{stl_forward.1} parent=1 // pred_fallthru
      _
    // Predicated region
    $region26: #{stl_forward.1} parent=1 // pred_check
      _
    $region27: #{stl_forward.1} parent=1 // pred_check_branch
      %67 = sbr.rel (0) target = $region29
    $region28: #{stl_forward.1} parent=1 // pred_region
      %68 = dma.done [#allocation6], 1024
    $region29: #{stl_forward.1} parent=1 // pred_fallthru
      _
    // Predicated region
    $region30: #{stl_forward.1} parent=1 // pred_check
      _
    $region31: #{stl_forward.1} parent=1 // pred_check_branch
      %70 = sbr.rel (0) target = $region33
    $region32: #{stl_forward.1} parent=1 // pred_region
      %71 = dma.done [#allocation9], 2048
    $region33: #{stl_forward.1} parent=1 // pred_fallthru
      _
    %v73 = vld [vmem:[#allocation2] sm:$0xff]
    %v74 = vld [vmem:[#allocation5] sm:$0xf]
    %v75 = vtanh.pop %v74
    %v76 = vpack.c.bf16 %v73, %v73
    %v77 = vpack.c.bf16 %v75, %v75
    %v78 = vld [vmem:[#allocation7] sm:$0xf]
    %v79 = vld [vmem:[#allocation7 + $0x4] sm:$0xf]
    %v80 = vld [vmem:[#allocation7 + $0x8] sm:$0xf]
    %v81 = vld [vmem:[#allocation7 + $0xc] sm:$0xf]
    %v82 = vld [vmem:[#allocation7 + $0x10] sm:$0xf]
    %v83 = vld [vmem:[#allocation7 + $0x14] sm:$0xf]
    %v84 = vld [vmem:[#allocation7 + $0x18] sm:$0xf]
    %v85 = vld [vmem:[#allocation7 + $0x1c] sm:$0xf]
    %v86 = vld [vmem:[#allocation7 + $0x20] sm:$0xf]
    %v87 = vld [vmem:[#allocation7 + $0x24] sm:$0xf]
    %v88 = vld [vmem:[#allocation7 + $0x28] sm:$0xf]
    %v89 = vld [vmem:[#allocation7 + $0x2c] sm:$0xf]
    %v90 = vld [vmem:[#allocation7 + $0x30] sm:$0xf]
    %v91 = vld [vmem:[#allocation7 + $0x34] sm:$0xf]
    %v92 = vld [vmem:[#allocation7 + $0x38] sm:$0xf]
    %v93 = vld [vmem:[#allocation7 + $0x3c] sm:$0xf]
    %v110 = vunpack.c.l.b16 %v78
    %v111 = vunpack.c.l.b16 %v79
    %v112 = vunpack.c.l.b16 %v80
    %v113 = vunpack.c.l.b16 %v81
    %v114 = vunpack.c.l.b16 %v82
    %v115 = vunpack.c.l.b16 %v83
    %v116 = vunpack.c.l.b16 %v84
    %v117 = vunpack.c.l.b16 %v85
    %v118 = vunpack.c.l.b16 %v86
    %v119 = vunpack.c.l.b16 %v87
    %v120 = vunpack.c.l.b16 %v88
    %v121 = vunpack.c.l.b16 %v89
    %v122 = vunpack.c.l.b16 %v90
    %v123 = vunpack.c.l.b16 %v91
    %v124 = vunpack.c.l.b16 %v92
    %v125 = vunpack.c.l.b16 %v93
    %v126 = vpack.c.b16 %v111, %v110
    %v127 = vpack.c.b16 %v113, %v112
    %v128 = vpack.c.b16 %v115, %v114
    %v129 = vpack.c.b16 %v117, %v116
    %v130 = vpack.c.b16 %v119, %v118
    %v131 = vpack.c.b16 %v121, %v120
    %v132 = vpack.c.b16 %v123, %v122
    %v133 = vpack.c.b16 %v125, %v124
    %142 = vmatprep.subr.bf16.mxu0 0
    %143 = vmatpush1.bf16.msra.mxu0 %v133
    %144 = vmatprep.subr.bf16.mxu0 0
    %145 = vmatpush1.bf16.msra.mxu0 %v132
    %146 = vmatprep.subr.bf16.mxu0 0
    %147 = vmatpush1.bf16.msra.mxu0 %v131
    %148 = vmatprep.subr.bf16.mxu0 0
    %149 = vmatpush1.bf16.msra.mxu0 %v130
    %150 = vmatprep.subr.bf16.mxu0 0
    %151 = vmatpush1.bf16.msra.mxu0 %v129
    %152 = vmatprep.subr.bf16.mxu0 0
    %153 = vmatpush1.bf16.msra.mxu0 %v128
    %154 = vmatprep.subr.bf16.mxu0 0
    %155 = vmatpush1.bf16.msra.mxu0 %v127
    %156 = vmatprep.subr.bf16.mxu0 0
    %157 = vmatpush1.bf16.msra.mxu0 %v126
    %158 = vmatprep.subr.bf16.mxu0 0
    %159 = vmatpush2.bf16.msra.mxu0 0
    %160 = vmatprep.subr.bf16.mxu0 0
    %161 = vmatpush2.bf16.msra.mxu0 0
    %162 = vmatprep.subr.bf16.mxu0 0
    %163 = vmatpush2.bf16.msra.mxu0 0
    %164 = vmatprep.subr.bf16.mxu0 0
    %165 = vmatpush2.bf16.msra.mxu0 0
    %166 = vmatprep.subr.bf16.mxu0 0
    %167 = vmatpush2.bf16.msra.mxu0 0
    %168 = vmatprep.subr.bf16.mxu0 0
    %169 = vmatpush2.bf16.msra.mxu0 0
    %170 = vmatprep.subr.bf16.mxu0 0
    %171 = vmatpush2.bf16.msra.mxu0 0
    %172 = vmatprep.subr.bf16.mxu0 0
    %173 = vmatpush2.bf16.msra.mxu0 0
    %174 = vmatprep.mubr.bf16.mxu0 0
    %175 = vmatmul.mubr.bf16.gmra.mxu0 %v76
    %v176 = vpop.f32.mrf.mxu0
    %v177 = vadd.f32 0.0, %v176
    %v178 = vpop.f32.mrf.mxu0
    %v179 = vpop.f32.mrf.mxu0
    %v180 = vpop.f32.mrf.mxu0
    %181 = vdwg.mxu0
    %v182 = vld [vmem:[#allocation8] sm:$0xff]
    %v183 = vld [vmem:[#allocation8 + $0x8] sm:$0xff]
    %v184 = vld [vmem:[#allocation8 + $0x10] sm:$0xff]
    %v185 = vld [vmem:[#allocation8 + $0x18] sm:$0xff]
    %v186 = vld [vmem:[#allocation8 + $0x20] sm:$0xff]
    %v187 = vld [vmem:[#allocation8 + $0x28] sm:$0xff]
    %v188 = vld [vmem:[#allocation8 + $0x30] sm:$0xff]
    %v189 = vld [vmem:[#allocation8 + $0x38] sm:$0xff]
    %v190 = vld [vmem:[#allocation8 + $0x40] sm:$0xff]
    %v191 = vld [vmem:[#allocation8 + $0x48] sm:$0xff]
    %v192 = vld [vmem:[#allocation8 + $0x50] sm:$0xff]
    %v193 = vld [vmem:[#allocation8 + $0x58] sm:$0xff]
    %v194 = vld [vmem:[#allocation8 + $0x60] sm:$0xff]
    %v195 = vld [vmem:[#allocation8 + $0x68] sm:$0xff]
    %v196 = vld [vmem:[#allocation8 + $0x70] sm:$0xff]
    %v197 = vld [vmem:[#allocation8 + $0x78] sm:$0xff]
    %v214 = vunpack.c.l.b16 %v182
    %v215 = vunpack.c.h.b16 %v182
    %v216 = vunpack.c.l.b16 %v183
    %v217 = vunpack.c.h.b16 %v183
    %v218 = vunpack.c.l.b16 %v184
    %v219 = vunpack.c.h.b16 %v184
    %v220 = vunpack.c.l.b16 %v185
    %v221 = vunpack.c.h.b16 %v185
    %v222 = vunpack.c.l.b16 %v186
    %v223 = vunpack.c.h.b16 %v186
    %v224 = vunpack.c.l.b16 %v187
    %v225 = vunpack.c.h.b16 %v187
    %v226 = vunpack.c.l.b16 %v188
    %v227 = vunpack.c.h.b16 %v188
    %v228 = vunpack.c.l.b16 %v189
    %v229 = vunpack.c.h.b16 %v189
    %v230 = vunpack.c.l.b16 %v190
    %v231 = vunpack.c.h.b16 %v190
    %v232 = vunpack.c.l.b16 %v191
    %v233 = vunpack.c.h.b16 %v191
    %v234 = vunpack.c.l.b16 %v192
    %v235 = vunpack.c.h.b16 %v192
    %v236 = vunpack.c.l.b16 %v193
    %v237 = vunpack.c.h.b16 %v193
    %v238 = vunpack.c.l.b16 %v194
    %v239 = vunpack.c.h.b16 %v194
    %v240 = vunpack.c.l.b16 %v195
    %v241 = vunpack.c.h.b16 %v195
    %v242 = vunpack.c.l.b16 %v196
    %v243 = vunpack.c.h.b16 %v196
    %v244 = vunpack.c.l.b16 %v197
    %v245 = vunpack.c.h.b16 %v197
    %v246 = vpack.c.b16 %v216, %v214
    %v247 = vpack.c.b16 %v217, %v215
    %v248 = vpack.c.b16 %v220, %v218
    %v249 = vpack.c.b16 %v221, %v219
    %v250 = vpack.c.b16 %v224, %v222
    %v251 = vpack.c.b16 %v225, %v223
    %v252 = vpack.c.b16 %v228, %v226
    %v253 = vpack.c.b16 %v229, %v227
    %v254 = vpack.c.b16 %v232, %v230
    %v255 = vpack.c.b16 %v233, %v231
    %v256 = vpack.c.b16 %v236, %v234
    %v257 = vpack.c.b16 %v237, %v235
    %v258 = vpack.c.b16 %v240, %v238
    %v259 = vpack.c.b16 %v241, %v239
    %v260 = vpack.c.b16 %v244, %v242
    %v261 = vpack.c.b16 %v245, %v243
    %278 = vmatprep.subr.bf16.mxu0 %v261
    %279 = vmatpush1.bf16.msra.mxu0 %v260
    %280 = vmatprep.subr.bf16.mxu0 %v259
    %281 = vmatpush1.bf16.msra.mxu0 %v258
    %282 = vmatprep.subr.bf16.mxu0 %v257
    %283 = vmatpush1.bf16.msra.mxu0 %v256
    %284 = vmatprep.subr.bf16.mxu0 %v255
    %285 = vmatpush1.bf16.msra.mxu0 %v254
    %286 = vmatprep.subr.bf16.mxu0 %v253
    %287 = vmatpush1.bf16.msra.mxu0 %v252
    %288 = vmatprep.subr.bf16.mxu0 %v251
    %289 = vmatpush1.bf16.msra.mxu0 %v250
    %290 = vmatprep.subr.bf16.mxu0 %v249
    %291 = vmatpush1.bf16.msra.mxu0 %v248
    %292 = vmatprep.subr.bf16.mxu0 %v247
    %293 = vmatpush1.bf16.msra.mxu0 %v246
    %294 = vmatprep.subr.bf16.mxu0 0
    %295 = vmatpush2.bf16.msra.mxu0 0
    %296 = vmatprep.subr.bf16.mxu0 0
    %297 = vmatpush2.bf16.msra.mxu0 0
    %298 = vmatprep.subr.bf16.mxu0 0
    %299 = vmatpush2.bf16.msra.mxu0 0
    %300 = vmatprep.subr.bf16.mxu0 0
    %301 = vmatpush2.bf16.msra.mxu0 0
    %302 = vmatprep.subr.bf16.mxu0 0
    %303 = vmatpush2.bf16.msra.mxu0 0
    %304 = vmatprep.subr.bf16.mxu0 0
    %305 = vmatpush2.bf16.msra.mxu0 0
    %306 = vmatprep.subr.bf16.mxu0 0
    %307 = vmatpush2.bf16.msra.mxu0 0
    %308 = vmatprep.subr.bf16.mxu0 0
    %309 = vmatpush2.bf16.msra.mxu0 0
    %310 = vmatprep.mubr.bf16.mxu0 0
    %311 = vmatmul.mubr.bf16.gmra.mxu0 %v77
    %v312 = vpop.f32.mrf.mxu0
    %v313 = vadd.f32 0.0, %v312
    %v314 = vpop.f32.mrf.mxu0
    %v315 = vadd.f32 0.0, %v314
    %v316 = vpop.f32.mrf.mxu0
    %v317 = vpop.f32.mrf.mxu0
    %318 = vdwg.mxu0
    %319 = vmatprep.subr.mxu0 0.0
    %320 = vmatpush1.xpose.msra.mxu0 0.0
    %321 = vmatprep.subr.mxu0 0.0
    %322 = vmatpush1.xpose.msra.mxu0 0.0
    %323 = vmatprep.subr.mxu0 0.0
    %324 = vmatpush1.xpose.msra.mxu0 0.0
    %325 = vmatprep.subr.mxu0 0.0
    %326 = vmatpush1.xpose.msra.mxu0 0.0
    %327 = vmatprep.subr.mxu0 0.0
    %328 = vmatpush1.xpose.msra.mxu0 0.0
    %329 = vmatprep.subr.mxu0 0.0
    %330 = vmatpush1.xpose.msra.mxu0 0.0
    %331 = vmatprep.subr.mxu0 0.0
    %332 = vmatpush1.xpose.msra.mxu0 0.0
    %333 = vmatprep.subr.mxu0 0.0
    %334 = vmatpush1.xpose.msra.mxu0 0.0
    %335 = vmatprep.subr.mxu0 0.0
    %336 = vmatpush1.xpose.msra.mxu0 0.0
    %337 = vmatprep.subr.mxu0 0.0
    %338 = vmatpush1.xpose.msra.mxu0 0.0
    %339 = vmatprep.subr.mxu0 0.0
    %340 = vmatpush1.xpose.msra.mxu0 0.0
    %341 = vmatprep.subr.mxu0 0.0
    %342 = vmatpush1.xpose.msra.mxu0 0.0
    %343 = vmatprep.subr.mxu0 0.0
    %344 = vmatpush1.xpose.msra.mxu0 0.0
    %345 = vmatprep.subr.mxu0 0.0
    %346 = vmatpush1.xpose.msra.mxu0 0.0
    %347 = vmatprep.subr.mxu0 0.0
    %348 = vmatpush1.xpose.msra.mxu0 0.0
    %349 = vmatprep.subr.mxu0 0.0
    %350 = vmatpush1.xpose.msra.mxu0 %v313
    %351 = vmatprep.subr.mxu0 0.0
    %352 = vmatpush2.xpose.msra.mxu0 0.0
    %353 = vmatprep.subr.mxu0 0.0
    %354 = vmatpush2.xpose.msra.mxu0 0.0
    %355 = vmatprep.subr.mxu0 0.0
    %356 = vmatpush2.xpose.msra.mxu0 0.0
    %357 = vmatprep.subr.mxu0 0.0
    %358 = vmatpush2.xpose.msra.mxu0 0.0
    %359 = vmatprep.subr.mxu0 0.0
    %360 = vmatpush2.xpose.msra.mxu0 0.0
    %361 = vmatprep.subr.mxu0 0.0
    %362 = vmatpush2.xpose.msra.mxu0 0.0
    %363 = vmatprep.subr.mxu0 0.0
    %364 = vmatpush2.xpose.msra.mxu0 0.0
    %365 = vmatprep.subr.mxu0 0.0
    %366 = vmatpush2.xpose.msra.mxu0 0.0
    %367 = vmatprep.subr.mxu0 0.0
    %368 = vmatpush2.xpose.msra.mxu0 0.0
    %369 = vmatprep.subr.mxu0 0.0
    %370 = vmatpush2.xpose.msra.mxu0 0.0
    %371 = vmatprep.subr.mxu0 0.0
    %372 = vmatpush2.xpose.msra.mxu0 0.0
    %373 = vmatprep.subr.mxu0 0.0
    %374 = vmatpush2.xpose.msra.mxu0 0.0
    %375 = vmatprep.subr.mxu0 0.0
    %376 = vmatpush2.xpose.msra.mxu0 0.0
    %377 = vmatprep.subr.mxu0 0.0
    %378 = vmatpush2.xpose.msra.mxu0 0.0
    %379 = vmatprep.subr.mxu0 0.0
    %380 = vmatpush2.xpose.msra.mxu0 0.0
    %381 = vmatprep.subr.mxu0 0.0
    %382 = vmatpush2.xpose.msra.mxu0 0.0
    %383 = vmatprep.mubr.f32.mxu0 0.0
    %384 = vmatmul.mubr.f32.gmra.mxu0 %v177
    %v385 = vpop.f32.mrf.mxu0
    %v386 = vadd.f32 0.0, %v385
    %v387 = vpop.f32.mrf.mxu0
    %388 = vdwg.mxu0
    %v389 = vmul.f32 %v386, 0.088388346
    %vm390 = vcmask 31744
    %v391 = vsel %vm390, %v389, -inf
    %392 = vmax.xlane.f32.xlu0 %v391
    %v393 = vpop.xlane.xlu0 %392
    %v394 = vsub.f32 %v389, %v393
    %v395 = vmul.f32 %v394, 1.442695
    %v396 = vpow.pop %v395
    %v397 = vsel %vm390, %v396, 0.0
    %398 = vadd.xlane.f32.xlu0 %v397
    %v399 = vpop.xlane.xlu0 %398
    %v400 = vrcp.pop %v399
    %v401 = vmul.f32 %v396, %v400
    %v403 = vsel %vm390, %v401, 0
    %vm405 = vcmask 1043456
    %v407 = vsel %vm405, %v315, 0
    %409 = vmatprep.subr.mxu0 0.0
    %410 = vmatpush1.msra.mxu0 0.0
    %411 = vmatprep.subr.mxu0 0.0
    %412 = vmatpush1.msra.mxu0 0.0
    %413 = vmatprep.subr.mxu0 0.0
    %414 = vmatpush1.msra.mxu0 0.0
    %415 = vmatprep.subr.mxu0 0.0
    %416 = vmatpush1.msra.mxu0 0.0
    %417 = vmatprep.subr.mxu0 0.0
    %418 = vmatpush1.msra.mxu0 0.0
    %419 = vmatprep.subr.mxu0 0.0
    %420 = vmatpush1.msra.mxu0 0.0
    %421 = vmatprep.subr.mxu0 0.0
    %422 = vmatpush1.msra.mxu0 0.0
    %423 = vmatprep.subr.mxu0 0.0
    %424 = vmatpush1.msra.mxu0 0.0
    %425 = vmatprep.subr.mxu0 0.0
    %426 = vmatpush1.msra.mxu0 0.0
    %427 = vmatprep.subr.mxu0 0.0
    %428 = vmatpush1.msra.mxu0 0.0
    %429 = vmatprep.subr.mxu0 0.0
    %430 = vmatpush1.msra.mxu0 0.0
    %431 = vmatprep.subr.mxu0 0.0
    %432 = vmatpush1.msra.mxu0 0.0
    %433 = vmatprep.subr.mxu0 0.0
    %434 = vmatpush1.msra.mxu0 0.0
    %435 = vmatprep.subr.mxu0 0.0
    %436 = vmatpush1.msra.mxu0 0.0
    %437 = vmatprep.subr.mxu0 0.0
    %438 = vmatpush1.msra.mxu0 0.0
    %439 = vmatprep.subr.mxu0 0.0
    %440 = vmatpush1.msra.mxu0 %v407
    %441 = vmatprep.subr.mxu0 0.0
    %442 = vmatpush2.msra.mxu0 0.0
    %443 = vmatprep.subr.mxu0 0.0
    %444 = vmatpush2.msra.mxu0 0.0
    %445 = vmatprep.subr.mxu0 0.0
    %446 = vmatpush2.msra.mxu0 0.0
    %447 = vmatprep.subr.mxu0 0.0
    %448 = vmatpush2.msra.mxu0 0.0
    %449 = vmatprep.subr.mxu0 0.0
    %450 = vmatpush2.msra.mxu0 0.0
    %451 = vmatprep.subr.mxu0 0.0
    %452 = vmatpush2.msra.mxu0 0.0
    %453 = vmatprep.subr.mxu0 0.0
    %454 = vmatpush2.msra.mxu0 0.0
    %455 = vmatprep.subr.mxu0 0.0
    %456 = vmatpush2.msra.mxu0 0.0
    %457 = vmatprep.subr.mxu0 0.0
    %458 = vmatpush2.msra.mxu0 0.0
    %459 = vmatprep.subr.mxu0 0.0
    %460 = vmatpush2.msra.mxu0 0.0
    %461 = vmatprep.subr.mxu0 0.0
    %462 = vmatpush2.msra.mxu0 0.0
    %463 = vmatprep.subr.mxu0 0.0
    %464 = vmatpush2.msra.mxu0 0.0
    %465 = vmatprep.subr.mxu0 0.0
    %466 = vmatpush2.msra.mxu0 0.0
    %467 = vmatprep.subr.mxu0 0.0
    %468 = vmatpush2.msra.mxu0 0.0
    %469 = vmatprep.subr.mxu0 0.0
    %470 = vmatpush2.msra.mxu0 0.0
    %471 = vmatprep.subr.mxu0 0.0
    %472 = vmatpush2.msra.mxu0 0.0
    %473 = vmatprep.mubr.f32.mxu0 0.0
    %474 = vmatmul.mubr.f32.gmra.mxu0 %v403
    %v475 = vpop.f32.mrf.mxu0
    %v476 = vadd.f32 0.0, %v475
    %v477 = vpop.f32.mrf.mxu0
    %478 = vdwg.mxu0
    %v479 = vlaneseq
    %v480 = vshrl.u32 %v479, 7
    %v481 = vlaneseq
    %v482 = vand.u32 %v481, 127
    %vm483 = vcmp.eq.s32.totalorder %v480, %v482
    %v484 = vsel %vm483, 1, 0
    %v485 = vcvt.s32.f32 %v484
    %v487 = vsel %vm405, %v485, 0
    %489 = vmatprep.subr.mxu0 0.0
    %490 = vmatpush1.msra.mxu0 0.0
    %491 = vmatprep.subr.mxu0 0.0
    %492 = vmatpush1.msra.mxu0 0.0
    %493 = vmatprep.subr.mxu0 0.0
    %494 = vmatpush1.msra.mxu0 0.0
    %495 = vmatprep.subr.mxu0 0.0
    %496 = vmatpush1.msra.mxu0 0.0
    %497 = vmatprep.subr.mxu0 0.0
    %498 = vmatpush1.msra.mxu0 0.0
    %499 = vmatprep.subr.mxu0 0.0
    %500 = vmatpush1.msra.mxu0 0.0
    %501 = vmatprep.subr.mxu0 0.0
    %502 = vmatpush1.msra.mxu0 0.0
    %503 = vmatprep.subr.mxu0 0.0
    %504 = vmatpush1.msra.mxu0 0.0
    %505 = vmatprep.subr.mxu0 0.0
    %506 = vmatpush1.msra.mxu0 0.0
    %507 = vmatprep.subr.mxu0 0.0
    %508 = vmatpush1.msra.mxu0 0.0
    %509 = vmatprep.subr.mxu0 0.0
    %510 = vmatpush1.msra.mxu0 0.0
    %511 = vmatprep.subr.mxu0 0.0
    %512 = vmatpush1.msra.mxu0 0.0
    %513 = vmatprep.subr.mxu0 0.0
    %514 = vmatpush1.msra.mxu0 0.0
    %515 = vmatprep.subr.mxu0 0.0
    %516 = vmatpush1.msra.mxu0 0.0
    %517 = vmatprep.subr.mxu0 0.0
    %518 = vmatpush1.msra.mxu0 0.0
    %519 = vmatprep.subr.mxu0 0.0
    %520 = vmatpush1.msra.mxu0 %v487
    %521 = vmatprep.subr.mxu0 0.0
    %522 = vmatpush2.msra.mxu0 0.0
    %523 = vmatprep.subr.mxu0 0.0
    %524 = vmatpush2.msra.mxu0 0.0
    %525 = vmatprep.subr.mxu0 0.0
    %526 = vmatpush2.msra.mxu0 0.0
    %527 = vmatprep.subr.mxu0 0.0
    %528 = vmatpush2.msra.mxu0 0.0
    %529 = vmatprep.subr.mxu0 0.0
    %530 = vmatpush2.msra.mxu0 0.0
    %531 = vmatprep.subr.mxu0 0.0
    %532 = vmatpush2.msra.mxu0 0.0
    %533 = vmatprep.subr.mxu0 0.0
    %534 = vmatpush2.msra.mxu0 0.0
    %535 = vmatprep.subr.mxu0 0.0
    %536 = vmatpush2.msra.mxu0 0.0
    %537 = vmatprep.subr.mxu0 0.0
    %538 = vmatpush2.msra.mxu0 0.0
    %539 = vmatprep.subr.mxu0 0.0
    %540 = vmatpush2.msra.mxu0 0.0
    %541 = vmatprep.subr.mxu0 0.0
    %542 = vmatpush2.msra.mxu0 0.0
    %543 = vmatprep.subr.mxu0 0.0
    %544 = vmatpush2.msra.mxu0 0.0
    %545 = vmatprep.subr.mxu0 0.0
    %546 = vmatpush2.msra.mxu0 0.0
    %547 = vmatprep.subr.mxu0 0.0
    %548 = vmatpush2.msra.mxu0 0.0
    %549 = vmatprep.subr.mxu0 0.0
    %550 = vmatpush2.msra.mxu0 0.0
    %551 = vmatprep.subr.mxu0 0.0
    %552 = vmatpush2.msra.mxu0 0.0
    %553 = vmatprep.mubr.f32.mxu0 0.0
    %554 = vmatmul.mubr.f32.gmra.mxu0 %v403
    %v555 = vpop.f32.mrf.mxu0
    %v556 = vadd.f32 0.0, %v555
    %v557 = vpop.f32.mrf.mxu0
    %558 = vdwg.mxu0
    %559 = vst [vmem:[#allocation10] sm:$0xff] %v476
    %560 = vst [vmem:[%s5] sm:$0xf] %v75
    %561 = vst [vmem:[%s6] sm:$0xff] %v556
    // Predicated region
    $region34: #{stl_forward.1} parent=1 // pred_check
      _
    $region35: #{stl_forward.1} parent=1 // pred_check_branch
      %563 = sbr.rel (0) target = $region37
    $region36: #{stl_forward.1} parent=1 // pred_region
      %s565 = ssub.s32 128, 128
      %566 = vsyncadd [#allocation4], %s565
      %s568 = sshll.u32 [#allocation10], 4
      %s569 = int_to_ptr.vmem [resolvable:$true] %s568
      %571 = dma.vmem_to_hbm [thread:$0]  %s569, 128, %s4, [#allocation4]
    $region37: #{stl_forward.1} parent=1 // pred_fallthru
      _
    // Predicated region
    $region38: #{stl_forward.1} parent=1 // pred_check
      _
    $region39: #{stl_forward.1} parent=1 // pred_check_branch
      %573 = sbr.rel (0) target = $region41
    $region40: #{stl_forward.1} parent=1 // pred_region
      _
    $region41: #{stl_forward.1} parent=1 // pred_fallthru
      _
    // Predicated region
    $region42: #{stl_forward.1} parent=1 // pred_check
      _
    $region43: #{stl_forward.1} parent=1 // pred_check_branch
      %575 = sbr.rel (0) target = $region45
    $region44: #{stl_forward.1} parent=1 // pred_region
      _
    $region45: #{stl_forward.1} parent=1 // pred_fallthru
      _
    // Predicated region
    $region46: #{stl_forward.1} parent=1 // pred_check
      _
    $region47: #{stl_forward.1} parent=1 // pred_check_branch
      %577 = sbr.rel (0) target = $region49
    $region48: #{stl_forward.1} parent=1 // pred_region
      %578 = dma.done [#allocation4], 128
    $region49: #{stl_forward.1} parent=1 // pred_fallthru
      _
    // Predicated region
    $region50: #{stl_forward.1} parent=1 // pred_check
      _
    $region51: #{stl_forward.1} parent=1 // pred_check_branch
      %580 = sbr.rel (0) target = $region53
    $region52: #{stl_forward.1} parent=1 // pred_region
      _
    $region53: #{stl_forward.1} parent=1 // pred_fallthru
      _
    // Predicated region
    $region54: #{stl_forward.1} parent=1 // pred_check
      _
    $region55: #{stl_forward.1} parent=1 // pred_check_branch
      %582 = sbr.rel (0) target = $region57
    $region56: #{stl_forward.1} parent=1 // pred_region
      _
    $region57: #{stl_forward.1} parent=1 // pred_fallthru
      _
    %583 = vsyncpa [#allocation3], 1
    %584 = vsyncpa [#allocation6], 1
    %585 = vsyncpa [#allocation9], 1
    %586 = vsyncpa [#allocation4], 1

</llo_original>
